<compile_context>
chip_gen: v7x
topology: tpu7x:2x2x1
jax: 0.10.0
libtpu: 0.0.40
codegen_flags: <defaults>
</compile_context>

<pallas_src>
import functools

import jax
import jax.numpy as jnp
from jax.experimental import pallas as pl
from jax.experimental.pallas import tpu as pltpu


def _round_up(x, m):
    return ((x + m - 1) // m) * m


def _choose_channel_tile(c_pad8, tb, hw_pad, budget_bytes):
    """Largest channel tile (multiple of 8) s.t. 2 inputs x 2 pipeline buffers fit budget."""
    max_tc = budget_bytes // (2 * 2 * tb * hw_pad * 4)  # f32 bytes
    max_tc = max(8, (max_tc // 8) * 8)
    if c_pad8 <= max_tc:
        return c_pad8
    for tc in range(max_tc, 7, -8):  # prefer a tile that divides C (no extra padding)
        if c_pad8 % tc == 0:
            return tc
    return 8


def _at_loss_kernel(fs_ref, ft_ref, out_ref, acc_s_ref, acc_t_ref, *, c_true):
    # fs_ref / ft_ref: (TB, TC, HWp) tile; grid = (batch blocks, channel blocks)
    k = pl.program_id(1)

    @pl.when(k == 0)
    def _():
        acc_s_ref[...] = jnp.zeros_like(acc_s_ref)
        acc_t_ref[...] = jnp.zeros_like(acc_t_ref)

    fs = fs_ref[...].astype(jnp.float32)               # (TB, TC, HWp)
    ft = ft_ref[...].astype(jnp.float32)
    acc_s_ref[...] += jnp.sum(fs * fs, axis=1)         # (TB, HWp) channel sum-of-squares
    acc_t_ref[...] += jnp.sum(ft * ft, axis=1)

    @pl.when(k == pl.num_programs(1) - 1)
    def _():
        inv_c = jnp.float32(1.0 / c_true)              # mean over TRUE channel count
        a_s = acc_s_ref[...] * inv_c                   # (TB, HWp)
        a_t = acc_t_ref[...] * inv_c
        eps = jnp.float32(1e-12)                       # F.normalize eps
        n_s = jnp.maximum(jnp.sqrt(jnp.sum(a_s * a_s, axis=-1, keepdims=True)), eps)
        n_t = jnp.maximum(jnp.sqrt(jnp.sum(a_t * a_t, axis=-1, keepdims=True)), eps)
        d = a_s / n_s - a_t / n_t                      # padded rows/lanes give exactly 0
        part = jnp.sum(d * d)                          # scalar partial for this batch block
        # lane-dense tile-aligned output block; the partial sum sits at [0, 0, 0]
        row = jax.lax.broadcasted_iota(jnp.int32, (1, 8, 128), 1)
        col = jax.lax.broadcasted_iota(jnp.int32, (1, 8, 128), 2)
        out_ref[...] = jnp.where((row == 0) & (col == 0), part, jnp.float32(0.0))


def at_loss_pallas(f_s, f_t, *, batch_tile=8,
                   vmem_input_budget=28 * 1024 * 1024,
                   vmem_limit_bytes=48 * 1024 * 1024):
    """f_s, f_t: (N, C, H, W) float32. Returns scalar float32 AT loss for this pair."""
    N, C, H, W = f_s.shape
    HW = H * W

    fs = f_s.reshape(N, C, HW).astype(jnp.float32)
    ft = jax.lax.stop_gradient(f_t).reshape(N, C, HW).astype(jnp.float32)  # .detach()

    # Lane/sublane-friendly padded shapes (zeros are exact no-ops for this loss).
    HWp = _round_up(HW, 128)
    Cp8 = _round_up(C, 8)
    TB = max(1, min(batch_tile, N))
    Np = _round_up(N, TB)
    TC = _choose_channel_tile(Cp8, TB, HWp, vmem_input_budget)
    Cp = _round_up(Cp8, TC)

    if (Np, Cp, HWp) != (N, C, HW):
        fs = jnp.pad(fs, ((0, Np - N), (0, Cp - C), (0, HWp - HW)))
        ft = jnp.pad(ft, ((0, Np - N), (0, Cp - C), (0, HWp - HW)))

    nb = Np // TB
    nc = Cp // TC

    kernel = functools.partial(_at_loss_kernel, c_true=C)

    partials = pl.pallas_call(
        kernel,
        out_shape=jax.ShapeDtypeStruct((nb, 8, 128), jnp.float32),
        grid_spec=pltpu.PrefetchScalarGridSpec(
            num_scalar_prefetch=0,
            grid=(nb, nc),
            in_specs=[
                pl.BlockSpec((TB, TC, HWp), lambda i, k: (i, k, 0)),
                pl.BlockSpec((TB, TC, HWp), lambda i, k: (i, k, 0)),
            ],
            out_specs=pl.BlockSpec((1, 8, 128), lambda i, k: (i, 0, 0)),
            scratch_shapes=[
                pltpu.VMEM((TB, HWp), jnp.float32),   # student sum-of-squares
                pltpu.VMEM((TB, HWp), jnp.float32),   # teacher sum-of-squares
            ],
        ),
        compiler_params=pltpu.CompilerParams(
            dimension_semantics=("parallel", "arbitrary"),
            vmem_limit_bytes=vmem_limit_bytes,
        ),
    )(fs, ft)

    # mean over the TRUE (N, HW) elements; padded rows / lanes / channels contributed 0
    return jnp.sum(partials) / jnp.float32(N * HW)


def attention_forward(g_s, g_t):
    """Equivalent of Attention.forward: sum of per-pair AT losses."""
    loss = jnp.float32(0.0)
    for f_s, f_t in zip(g_s, g_t):
        loss = loss + at_loss_pallas(f_s, f_t)
    return loss


def _at_loss_ref(f_s, f_t):
    def at(f):
        n = f.shape[0]
        a = jnp.mean(f * f, axis=1).reshape(n, -1)
        nrm = jnp.maximum(jnp.linalg.norm(a, axis=1, keepdims=True), 1e-12)
        return a / nrm

    d = at(f_s) - at(jax.lax.stop_gradient(f_t))
    return jnp.mean(d * d)


def _attention_ref(g_s, g_t):
    total = jnp.float32(0.0)
    for f_s, f_t in zip(g_s, g_t):
        total = total + _at_loss_ref(f_s, f_t)
    return total


if __name__ == "__main__":
    key = jax.random.PRNGKey(0)
    k1, k2, k3, k4, k5, k6 = jax.random.split(key, 6)

    # two pairs of student/teacher feature maps (NCHW)
    g_s = [
        jax.random.normal(k1, (2, 4, 16, 16), dtype=jnp.float32),
        jax.random.normal(k2, (2, 8, 16, 16), dtype=jnp.float32),
    ]
    g_t = [
        jax.random.normal(k3, (2, 4, 16, 16), dtype=jnp.float32),
        jax.random.normal(k4, (2, 8, 16, 16), dtype=jnp.float32),
    ]

    loss = attention_forward(g_s, g_t)
    loss = jax.block_until_ready(loss)
    ref = _attention_ref(g_s, g_t)
    assert jnp.allclose(loss, ref, rtol=1e-5, atol=1e-6), (loss, ref)

    # Also exercise the channel-tiled (nc > 1) and batch-padded (N % TB != 0) paths
    # by forcing a tiny VMEM budget and a batch tile of 2.
    fs3 = jax.random.normal(k5, (3, 32, 8, 8), dtype=jnp.float32)
    ft3 = jax.random.normal(k6, (3, 32, 8, 8), dtype=jnp.float32)
    loss3 = at_loss_pallas(fs3, ft3, batch_tile=2, vmem_input_budget=64 * 1024)
    loss3 = jax.block_until_ready(loss3)
    ref3 = _at_loss_ref(fs3, ft3)
    assert jnp.allclose(loss3, ref3, rtol=1e-5, atol=1e-6), (loss3, ref3)

    print("KERNEL_OK")
</pallas_src>

<mosaic_0001>
module attributes {stable_mosaic.version = 11 : i64} {
  func.func @_at_loss_kernel(%arg0: i32, %arg1: i32, %arg2: memref<2x8x256xf32, #tpu.memory_space<vmem>>, %arg3: memref<2x8x256xf32, #tpu.memory_space<vmem>>, %arg4: memref<1x8x128xf32, #tpu.memory_space<vmem>>, %arg5: memref<2x256xf32, #tpu.memory_space<vmem>>, %arg6: memref<2x256xf32, #tpu.memory_space<vmem>>) attributes {dimension_semantics = [#tpu.dimension_semantics<parallel>, #tpu.dimension_semantics<arbitrary>], iteration_bounds = array<i64: 1, 1>, scalar_prefetch = 0 : i64, scratch_operands = 2 : i64, tpu.core_type = #tpu.core_type<tc>, window_params = [{transform_indices = @transform_0, window_bounds = array<i64: 2, 8, 256>}, {transform_indices = @transform_1, window_bounds = array<i64: 2, 8, 256>}, {transform_indices = @transform_2, window_bounds = array<i64: 1, 8, 128>}]} {
    %c0_i32 = arith.constant 0 : i32
    %0 = arith.cmpi eq, %arg1, %c0_i32 : i32
    %1 = arith.extui %0 : i1 to i32
    %c0_i32_0 = arith.constant 0 : i32
    %2 = arith.cmpi ne, %1, %c0_i32_0 : i32
    scf.if %2 {
      %cst_17 = arith.constant 0.000000e+00 : f32
      %18 = vector.broadcast %cst_17 : f32 to vector<2x256xf32>
      %c0_18 = arith.constant 0 : index
      %c0_19 = arith.constant 0 : index
      %19 = vector.load %arg5[%c0_18, %c0_19] : memref<2x256xf32, #tpu.memory_space<vmem>>, vector<2x256xf32>
      tpu.vector_store %arg5[%c0_18, %c0_19], %18 {strides = array<i32>} : memref<2x256xf32, #tpu.memory_space<vmem>>, vector<2x256xf32>,
      %cst_20 = arith.constant 0.000000e+00 : f32
      %20 = vector.broadcast %cst_20 : f32 to vector<2x256xf32>
      %c0_21 = arith.constant 0 : index
      %c0_22 = arith.constant 0 : index
      %21 = vector.load %arg6[%c0_21, %c0_22] : memref<2x256xf32, #tpu.memory_space<vmem>>, vector<2x256xf32>
      tpu.vector_store %arg6[%c0_21, %c0_22], %20 {strides = array<i32>} : memref<2x256xf32, #tpu.memory_space<vmem>>, vector<2x256xf32>,
    } else {
    }
    %c0 = arith.constant 0 : index
    %c0_1 = arith.constant 0 : index
    %c0_2 = arith.constant 0 : index
    %3 = vector.load %arg2[%c0, %c0_1, %c0_2] : memref<2x8x256xf32, #tpu.memory_space<vmem>>, vector<2x8x256xf32>
    %c0_3 = arith.constant 0 : index
    %c0_4 = arith.constant 0 : index
    %c0_5 = arith.constant 0 : index
    %4 = vector.load %arg3[%c0_3, %c0_4, %c0_5] : memref<2x8x256xf32, #tpu.memory_space<vmem>>, vector<2x8x256xf32>
    %c0_6 = arith.constant 0 : index
    %c0_7 = arith.constant 0 : index
    %5 = vector.load %arg5[%c0_6, %c0_7] : memref<2x256xf32, #tpu.memory_space<vmem>>, vector<2x256xf32>
    %6 = arith.mulf %3, %3 : vector<2x8x256xf32>
    %cst = arith.constant dense<0.000000e+00> : vector<2x256xf32>
    %7 = vector.multi_reduction <add>, %6, %cst [1] : vector<2x8x256xf32> to vector<2x256xf32>
    %8 = arith.addf %5, %7 : vector<2x256xf32>
    %c0_8 = arith.constant 0 : index
    %c0_9 = arith.constant 0 : index
    %9 = vector.load %arg5[%c0_8, %c0_9] : memref<2x256xf32, #tpu.memory_space<vmem>>, vector<2x256xf32>
    tpu.vector_store %arg5[%c0_8, %c0_9], %8 {strides = array<i32>} : memref<2x256xf32, #tpu.memory_space<vmem>>, vector<2x256xf32>,
    %c0_10 = arith.constant 0 : index
    %c0_11 = arith.constant 0 : index
    %10 = vector.load %arg6[%c0_10, %c0_11] : memref<2x256xf32, #tpu.memory_space<vmem>>, vector<2x256xf32>
    %11 = arith.mulf %4, %4 : vector<2x8x256xf32>
    %cst_12 = arith.constant dense<0.000000e+00> : vector<2x256xf32>
    %12 = vector.multi_reduction <add>, %11, %cst_12 [1] : vector<2x8x256xf32> to vector<2x256xf32>
    %13 = arith.addf %10, %12 : vector<2x256xf32>
    %c0_13 = arith.constant 0 : index
    %c0_14 = arith.constant 0 : index
    %14 = vector.load %arg6[%c0_13, %c0_14] : memref<2x256xf32, #tpu.memory_space<vmem>>, vector<2x256xf32>
    tpu.vector_store %arg6[%c0_13, %c0_14], %13 {strides = array<i32>} : memref<2x256xf32, #tpu.memory_space<vmem>>, vector<2x256xf32>,
    %c0_i32_15 = arith.constant 0 : i32
    %15 = arith.cmpi eq, %arg1, %c0_i32_15 : i32
    %16 = arith.extui %15 : i1 to i32
    %c0_i32_16 = arith.constant 0 : i32
    %17 = arith.cmpi ne, %16, %c0_i32_16 : i32
    scf.if %17 {
      %c0_17 = arith.constant 0 : index
      %c0_18 = arith.constant 0 : index
      %18 = vector.load %arg5[%c0_17, %c0_18] : memref<2x256xf32, #tpu.memory_space<vmem>>, vector<2x256xf32>
      %cst_19 = arith.constant 2.500000e-01 : f32
      %19 = vector.broadcast %cst_19 : f32 to vector<2x256xf32>
      %20 = arith.mulf %18, %19 : vector<2x256xf32>
      %c0_20 = arith.constant 0 : index
      %c0_21 = arith.constant 0 : index
      %21 = vector.load %arg6[%c0_20, %c0_21] : memref<2x256xf32, #tpu.memory_space<vmem>>, vector<2x256xf32>
      %cst_22 = arith.constant 2.500000e-01 : f32
      %22 = vector.broadcast %cst_22 : f32 to vector<2x256xf32>
      %23 = arith.mulf %21, %22 : vector<2x256xf32>
      %24 = arith.mulf %20, %20 : vector<2x256xf32>
      %cst_23 = arith.constant dense<0.000000e+00> : vector<2xf32>
      %25 = vector.multi_reduction <add>, %24, %cst_23 [1] : vector<2x256xf32> to vector<2xf32>
      %26 = vector.shape_cast %25 : vector<2xf32> to vector<2x1xf32>
      %27 = math.sqrt %26 : vector<2x1xf32>
      %cst_24 = arith.constant 9.99999996E-13 : f32
      %28 = vector.broadcast %cst_24 : f32 to vector<2x1xf32>
      %29 = arith.maximumf %27, %28 : vector<2x1xf32>
      %30 = arith.mulf %23, %23 : vector<2x256xf32>
      %cst_25 = arith.constant dense<0.000000e+00> : vector<2xf32>
      %31 = vector.multi_reduction <add>, %30, %cst_25 [1] : vector<2x256xf32> to vector<2xf32>
      %32 = vector.shape_cast %31 : vector<2xf32> to vector<2x1xf32>
      %33 = math.sqrt %32 : vector<2x1xf32>
      %cst_26 = arith.constant 9.99999996E-13 : f32
      %34 = vector.broadcast %cst_26 : f32 to vector<2x1xf32>
      %35 = arith.maximumf %33, %34 : vector<2x1xf32>
      %36 = vector.broadcast %29 : vector<2x1xf32> to vector<2x256xf32>
      %37 = arith.divf %20, %36 : vector<2x256xf32>
      %38 = vector.broadcast %35 : vector<2x1xf32> to vector<2x256xf32>
      %39 = arith.divf %23, %38 : vector<2x256xf32>
      %40 = arith.subf %37, %39 : vector<2x256xf32>
      %41 = arith.mulf %40, %40 : vector<2x256xf32>
      %42 = vector.shape_cast %41 : vector<2x256xf32> to vector<1x2x256xf32>
      %cst_27 = arith.constant dense<0.000000e+00> : vector<1xf32>
      %43 = vector.multi_reduction <add>, %42, %cst_27 [1, 2] : vector<1x2x256xf32> to vector<1xf32>
      %44 = vector.shape_cast %43 : vector<1xf32> to vector<1x1x1xf32>
      %45 = vector.extract %44[0, 0, 0] : f32 from vector<1x1x1xf32>
      %46 = tpu.iota {dimensions = array<i32: 1>} : vector<1x8x128xi32>
      %47 = tpu.iota {dimensions = array<i32: 2>} : vector<1x8x128xi32>
      %c0_i32_28 = arith.constant 0 : i32
      %48 = vector.broadcast %c0_i32_28 : i32 to vector<1x8x128xi32>
      %49 = arith.cmpi eq, %46, %48 : vector<1x8x128xi32>
      %c0_i32_29 = arith.constant 0 : i32
      %50 = vector.broadcast %c0_i32_29 : i32 to vector<1x8x128xi32>
      %51 = arith.cmpi eq, %47, %50 : vector<1x8x128xi32>
      %52 = arith.andi %49, %51 : vector<1x8x128xi1>
      %cst_30 = arith.constant 0.000000e+00 : f32
      %53 = vector.broadcast %45 : f32 to vector<1x8x128xf32>
      %54 = vector.broadcast %cst_30 : f32 to vector<1x8x128xf32>
      %55 = arith.select %52, %53, %54 : vector<1x8x128xi1>, vector<1x8x128xf32>
      %c0_31 = arith.constant 0 : index
      %c0_32 = arith.constant 0 : index
      %c0_33 = arith.constant 0 : index
      %56 = vector.load %arg4[%c0_31, %c0_32, %c0_33] : memref<1x8x128xf32, #tpu.memory_space<vmem>>, vector<1x8x128xf32>
      tpu.vector_store %arg4[%c0_31, %c0_32, %c0_33], %55 {strides = array<i32>} : memref<1x8x128xf32, #tpu.memory_space<vmem>>, vector<1x8x128xf32>,
    } else {
    }
    return
  }
  func.func @transform_0(%arg0: i32, %arg1: i32) -> (i32, i32, i32) {
    %c0_i32 = arith.constant 0 : i32
    %c0_i32_0 = arith.constant 0 : i32
    return %arg0, %arg1, %c0_i32 : i32, i32, i32
  }
  func.func @transform_1(%arg0: i32, %arg1: i32) -> (i32, i32, i32) {
    %c0_i32 = arith.constant 0 : i32
    %c0_i32_0 = arith.constant 0 : i32
    return %arg0, %arg1, %c0_i32 : i32, i32, i32
  }
  func.func @transform_2(%arg0: i32, %arg1: i32) -> (i32, i32, i32) {
    %c0_i32 = arith.constant 0 : i32
    %c0_i32_0 = arith.constant 0 : i32
    %c0_i32_1 = arith.constant 0 : i32
    return %arg0, %c0_i32, %c0_i32_0 : i32, i32, i32
  }
}

</mosaic_0001>

<llo_original>
// kernel: tpu_custom_call.1
$region0: #{tpu_custom_call.1}
  #allocation0 [shape = 'u32[]', space=smem, size = 0x4, offset = 0x4, fixed_abs, tag = 'smem constant byte address 0x4 - core index']
  #allocation1 [shape = 'u32[144,128]{1,0:T(1,128)}', space=vmem, size = 0x12000, scoped, tag = 'internal scratch']
  #allocation2 [shape = 'f32[2,256]{1,0:T(2,128)}', space=vmem, size = 0x800, scoped, tag = 'scratch operand']
  #allocation3 [shape = 'f32[2,256]{1,0:T(2,128)}', space=vmem, size = 0x800, scoped, tag = 'scratch operand']
  %s0 = inlined_call_operand.hbm [shape: f32[2,8,256], index: 0, kind: input, shape index: {}]
  %s1 = inlined_call_operand.hbm [shape: f32[2,8,256], index: 1, kind: input, shape index: {}]
  %s2 = inlined_call_operand.hbm [shape: f32[1,8,128], index: 2, kind: output, shape index: {}]
  %s3 = sld [smem:[#allocation0]]
  $region34: #{tpu_custom_call.1} parent=0
    _
  %s5 = ssub.s32 1, %s3
  %s6 = scalar_select 0, %s5, %s3
  $region1: #{tpu_custom_call.1} parent=0
    #allocation4 [shape = 'u8[16384]{0}', space=vmem, size = 0x4000, scoped, tag = 'input window, operand 0, single buffered']
    #allocation5 [shape = 's32[1]{0}', space=sflag, size = 0x4, scoped, tag = 'scoped memory for tpu_custom_call.1']
    #allocation6 [shape = 's32[1]{0}', space=sflag, size = 0x4, scoped, tag = 'scoped memory for tpu_custom_call.1']
    #allocation7 [shape = 'u8[16384]{0}', space=vmem, size = 0x4000, scoped, tag = 'input window, operand 1, single buffered']
    #allocation8 [shape = 's32[1]{0}', space=sflag, size = 0x4, scoped, tag = 'scoped memory for tpu_custom_call.1']
    #allocation9 [shape = 'u8[4096]{0}', space=vmem, size = 0x1000, scoped, tag = 'output window, operand 0, single buffered']
    %7 = vsyncpa [#allocation5], 0
    %8 = vsyncpa [#allocation8], 0
    %9 = vsyncpa [#allocation6], 0
    // Predicated region
    $region2: #{tpu_custom_call.1} parent=1 // pred_check
      _
    $region3: #{tpu_custom_call.1} parent=1 // pred_check_branch
      %11 = sbr.rel (0) target = $region5
    $region4: #{tpu_custom_call.1} parent=1 // pred_region
      %s13 = ssub.s32 512, 512
      %14 = vsyncadd [#allocation5], %s13
      %s15 = sshll.u32 [#allocation4], 4
      %s16 = int_to_ptr.vmem [resolvable:$true] %s15
      %21 = dma.hbm_to_vmem [thread:$0]  %s0, 512, %s16, [#allocation5], 256, 256, 16
    $region5: #{tpu_custom_call.1} parent=1 // pred_fallthru
      _
    // Predicated region
    $region6: #{tpu_custom_call.1} parent=1 // pred_check
      _
    $region7: #{tpu_custom_call.1} parent=1 // pred_check_branch
      %23 = sbr.rel (0) target = $region9
    $region8: #{tpu_custom_call.1} parent=1 // pred_region
      %s25 = ssub.s32 512, 512
      %26 = vsyncadd [#allocation8], %s25
      %s27 = sshll.u32 [#allocation7], 4
      %s28 = int_to_ptr.vmem [resolvable:$true] %s27
      %33 = dma.hbm_to_vmem [thread:$0]  %s1, 512, %s28, [#allocation8], 256, 256, 16
    $region9: #{tpu_custom_call.1} parent=1 // pred_fallthru
      _
    // Predicated region
    $region10: #{tpu_custom_call.1} parent=1 // pred_check
      _
    $region11: #{tpu_custom_call.1} parent=1 // pred_check_branch
      %35 = sbr.rel (0) target = $region13
    $region12: #{tpu_custom_call.1} parent=1 // pred_region
      %36 = dma.done [#allocation5], 512
    $region13: #{tpu_custom_call.1} parent=1 // pred_fallthru
      _
    // Predicated region
    $region14: #{tpu_custom_call.1} parent=1 // pred_check
      _
    $region15: #{tpu_custom_call.1} parent=1 // pred_check_branch
      %38 = sbr.rel (0) target = $region17
    $region16: #{tpu_custom_call.1} parent=1 // pred_region
      %39 = dma.done [#allocation8], 512
    $region17: #{tpu_custom_call.1} parent=1 // pred_fallthru
      _
    %p40 = scmp.eq.s32.totalorder 0, 0
    // Predicated region
    $region18: #{tpu_custom_call.1} parent=1 // pred_check
      %p41 = pneg %p40
    $region19: #{tpu_custom_call.1} parent=1 // pred_check_branch
      %43 = sbr.rel (%p41) target = $region21
    $region20: #{tpu_custom_call.1} parent=1 // pred_region
      %44 = vst [vmem:[#allocation2] sm:$0xf] 0.0
      %45 = vst [vmem:[#allocation3] sm:$0xf] 0.0
    $region21: #{tpu_custom_call.1} parent=1 // pred_fallthru
      _
    %v46 = vld [vmem:[#allocation4] sm:$0xff]
    %v47 = vld [vmem:[#allocation4 + $0x8] sm:$0xff]
    %v48 = vld [vmem:[#allocation4 + $0x10] sm:$0xff]
    %v49 = vld [vmem:[#allocation4 + $0x18] sm:$0xff]
    %v50 = vld [vmem:[#allocation7] sm:$0xff]
    %v51 = vld [vmem:[#allocation7 + $0x8] sm:$0xff]
    %v52 = vld [vmem:[#allocation7 + $0x10] sm:$0xff]
    %v53 = vld [vmem:[#allocation7 + $0x18] sm:$0xff]
    %v54 = vld [vmem:[#allocation2] sm:$0xf]
    %v55 = vmul.f32 %v46, %v46
    %v56 = vmul.f32 %v47, %v47
    %v57 = vmul.f32 %v48, %v48
    %v58 = vmul.f32 %v49, %v49
    %v59 = vrot.slane %v55, 4
    %v60 = vadd.f32 %v55, %v59
    %v61 = vrot.slane %v60, 2
    %v62 = vadd.f32 %v60, %v61
    %v63 = vrot.slane %v62, 1
    %v64 = vadd.f32 %v62, %v63
    %v65 = vrot.slane %v56, 4
    %v66 = vadd.f32 %v56, %v65
    %v67 = vrot.slane %v66, 2
    %v68 = vadd.f32 %v66, %v67
    %v69 = vrot.slane %v68, 1
    %v70 = vadd.f32 %v68, %v69
    %v71 = vrot.slane %v57, 4
    %v72 = vadd.f32 %v57, %v71
    %v73 = vrot.slane %v72, 2
    %v74 = vadd.f32 %v72, %v73
    %v75 = vrot.slane %v74, 1
    %v76 = vadd.f32 %v74, %v75
    %v77 = vrot.slane %v58, 4
    %v78 = vadd.f32 %v58, %v77
    %v79 = vrot.slane %v78, 2
    %v80 = vadd.f32 %v78, %v79
    %v81 = vrot.slane %v80, 1
    %v82 = vadd.f32 %v80, %v81
    %v87 = vcombine.low %v64, %v70
    %v89 = vunpack.c.l.s4 1983009808
    %v90 = vunpack.c.0.s8 %v89
    %v91 = vlaneseq
    %v92 = vshrl.u32 %v91, 7
    %v93 = vsub.s32 %v90, %v92
    %v94 = vrot.slane %v87, %v93
    %v95 = vcombine.low %v76, %v82
    %v97 = vunpack.c.l.s4 1983009808
    %v98 = vunpack.c.0.s8 %v97
    %v99 = vlaneseq
    %v100 = vshrl.u32 %v99, 7
    %v101 = vsub.s32 %v98, %v100
    %v102 = vrot.slane %v95, %v101
    %vm103 = vcmask 1044484
    %v104 = vsel %vm103, %v94, %v94
    %vm105 = vcmask 1046534
    %v106 = vsel %vm105, %v94, %v104
    %v107 = vrot.slane %v102, 7
    %vm108 = vcmask 1041409
    %v109 = vsel %vm108, %v107, %v106
    %vm110 = vcmask 1043459
    %v111 = vsel %vm110, %v107, %v109
    %vm112 = vcmask 1045509
    %v113 = vsel %vm112, %v107, %v111
    %vm114 = vcmask 1047559
    %v115 = vsel %vm114, %v107, %v113
    %v117 = vadd.f32 %v54, %v115
    %118 = vst [vmem:[#allocation2] sm:$0xf] %v117
    %v119 = vld [vmem:[#allocation3] sm:$0xf]
    %v120 = vmul.f32 %v50, %v50
    %v121 = vmul.f32 %v51, %v51
    %v122 = vmul.f32 %v52, %v52
    %v123 = vmul.f32 %v53, %v53
    %v124 = vrot.slane %v120, 4
    %v125 = vadd.f32 %v120, %v124
    %v126 = vrot.slane %v125, 2
    %v127 = vadd.f32 %v125, %v126
    %v128 = vrot.slane %v127, 1
    %v129 = vadd.f32 %v127, %v128
    %v130 = vrot.slane %v121, 4
    %v131 = vadd.f32 %v121, %v130
    %v132 = vrot.slane %v131, 2
    %v133 = vadd.f32 %v131, %v132
    %v134 = vrot.slane %v133, 1
    %v135 = vadd.f32 %v133, %v134
    %v136 = vrot.slane %v122, 4
    %v137 = vadd.f32 %v122, %v136
    %v138 = vrot.slane %v137, 2
    %v139 = vadd.f32 %v137, %v138
    %v140 = vrot.slane %v139, 1
    %v141 = vadd.f32 %v139, %v140
    %v142 = vrot.slane %v123, 4
    %v143 = vadd.f32 %v123, %v142
    %v144 = vrot.slane %v143, 2
    %v145 = vadd.f32 %v143, %v144
    %v146 = vrot.slane %v145, 1
    %v147 = vadd.f32 %v145, %v146
    %v152 = vcombine.low %v129, %v135
    %v154 = vunpack.c.l.s4 1983009808
    %v155 = vunpack.c.0.s8 %v154
    %v156 = vlaneseq
    %v157 = vshrl.u32 %v156, 7
    %v158 = vsub.s32 %v155, %v157
    %v159 = vrot.slane %v152, %v158
    %v160 = vcombine.low %v141, %v147
    %v162 = vunpack.c.l.s4 1983009808
    %v163 = vunpack.c.0.s8 %v162
    %v164 = vlaneseq
    %v165 = vshrl.u32 %v164, 7
    %v166 = vsub.s32 %v163, %v165
    %v167 = vrot.slane %v160, %v166
    %v168 = vsel %vm103, %v159, %v159
    %v169 = vsel %vm105, %v159, %v168
    %v170 = vrot.slane %v167, 7
    %v171 = vsel %vm108, %v170, %v169
    %v172 = vsel %vm110, %v170, %v171
    %v173 = vsel %vm112, %v170, %v172
    %v174 = vsel %vm114, %v170, %v173
    %v176 = vadd.f32 %v119, %v174
    %177 = vst [vmem:[#allocation3] sm:$0xf] %v176
    // Predicated region
    $region22: #{tpu_custom_call.1} parent=1 // pred_check
      %p178 = pneg %p40
    $region23: #{tpu_custom_call.1} parent=1 // pred_check_branch
      %180 = sbr.rel (%p178) target = $region25
    $region24: #{tpu_custom_call.1} parent=1 // pred_region
      %v181 = vld [vmem:[#allocation2] sm:$0xf]
      %v182 = vmul.f32 %v181, 0.25
      %v183 = vld [vmem:[#allocation3] sm:$0xf]
      %v184 = vmul.f32 %v183, 0.25
      %v185 = vmul.f32 %v182, %v182
      %v188 = vunpack.c.l.s4 1983009808
      %v189 = vunpack.c.0.s8 %v188
      %v190 = vlaneseq
      %v191 = vshrl.u32 %v190, 7
      %v192 = vsub.s32 %v189, %v191
      %v193 = vrot.slane %v185, %v192
      %v194 = vcombine.high %v193, %v193
      %vm197 = vcmask 1041408
      %v198 = vsel %vm197, %v193, 0.0
      %v199 = vsel %vm197, %v194, 0.0
      %v200 = vadd.f32 %v198, %v199
      %201 = vadd.xlane.f32.xlu0 %v200
      %v202 = vpop.xlane.xlu0 %201
      %v203 = vrsqrt.pop %v202
      %v204 = vmul.f32 %v202, %v203
      %vm205 = vcmp.eq.f32.partialorder %v202, inf
      %v206 = vsel %vm205, %v202, %v204
      %vm207 = vcmp.eq.f32.partialorder %v202, 0.0
      %v208 = vand.u32 %v202, 2147483648
      %v209 = vsel %vm207, %v208, %v206
      %v210 = vmax.f32 %v209, 1e-12
      %v211 = vmul.f32 %v184, %v184
      %v214 = vunpack.c.l.s4 1983009808
      %v215 = vunpack.c.0.s8 %v214
      %v216 = vlaneseq
      %v217 = vshrl.u32 %v216, 7
      %v218 = vsub.s32 %v215, %v217
      %v219 = vrot.slane %v211, %v218
      %v220 = vcombine.high %v219, %v219
      %v223 = vsel %vm197, %v219, 0.0
      %v224 = vsel %vm197, %v220, 0.0
      %v225 = vadd.f32 %v223, %v224
      %226 = vadd.xlane.f32.xlu0 %v225
      %v227 = vpop.xlane.xlu0 %226
      %v228 = vrsqrt.pop %v227
      %v229 = vmul.f32 %v227, %v228
      %vm230 = vcmp.eq.f32.partialorder %v227, inf
      %v231 = vsel %vm230, %v227, %v229
      %vm232 = vcmp.eq.f32.partialorder %v227, 0.0
      %v233 = vand.u32 %v227, 2147483648
      %v234 = vsel %vm232, %v233, %v231
      %v235 = vmax.f32 %v234, 1e-12
      %v238 = vunpack.c.l.s4 269488144
      %v239 = vunpack.c.0.s8 %v238
      %v240 = vlaneseq
      %v241 = vshrl.u32 %v240, 7
      %v242 = vsub.s32 %v239, %v241
      %v243 = vrot.slane %v210, %v242
      %v245 = vrcp.pop %v243
      %v246 = vmul.f32 %v182, %v245
      %v249 = vunpack.c.l.s4 269488144
      %v250 = vunpack.c.0.s8 %v249
      %v251 = vlaneseq
      %v252 = vshrl.u32 %v251, 7
      %v253 = vsub.s32 %v250, %v252
      %v254 = vrot.slane %v235, %v253
      %v256 = vrcp.pop %v254
      %v257 = vmul.f32 %v184, %v256
      %v258 = vsub.f32 %v246, %v257
      %v259 = vmul.f32 %v258, %v258
      %v262 = vunpack.c.l.s4 1983009808
      %v263 = vunpack.c.0.s8 %v262
      %v264 = vlaneseq
      %v265 = vshrl.u32 %v264, 7
      %v266 = vsub.s32 %v263, %v265
      %v267 = vrot.slane %v259, %v266
      %v268 = vcombine.high %v267, %v267
      %v271 = vsel %vm197, %v267, 0.0
      %v272 = vsel %vm197, %v268, 0.0
      %v273 = vadd.f32 %v271, %v272
      %274 = vadd.xlane.f32.xlu0 %v273
      %v275 = vpop.xlane.xlu0 %274
      %v276 = vrot.slane %v275, 4
      %v277 = vadd.f32 %v275, %v276
      %v278 = vrot.slane %v277, 2
      %v279 = vadd.f32 %v277, %v278
      %v280 = vrot.slane %v279, 1
      %v281 = vadd.f32 %v279, %v280
      %s282 = vtos %v281
      %v283 = vlaneseq
      %v284 = vshrl.u32 %v283, 7
      %v285 = vlaneseq
      %v286 = vand.u32 %v285, 127
      %vm287 = vcmp.eq.s32.totalorder %v284, 0
      %vm288 = vcmp.eq.s32.totalorder %v286, 0
      %vm289 = vmand %vm287, %vm288
      %v290 = vstv %s282
      %v291 = vsel %vm289, %v290, 0.0
      %292 = vst [vmem:[#allocation9] sm:$0xff] %v291
    $region25: #{tpu_custom_call.1} parent=1 // pred_fallthru
      _
    // Predicated region
    $region26: #{tpu_custom_call.1} parent=1 // pred_check
      _
    $region27: #{tpu_custom_call.1} parent=1 // pred_check_branch
      %294 = sbr.rel (0) target = $region29
    $region28: #{tpu_custom_call.1} parent=1 // pred_region
      %s296 = ssub.s32 128, 128
      %297 = vsyncadd [#allocation6], %s296
      %s299 = sshll.u32 [#allocation9], 4
      %s300 = int_to_ptr.vmem [resolvable:$true] %s299
      %302 = dma.vmem_to_hbm [thread:$0]  %s300, 128, %s2, [#allocation6]
    $region29: #{tpu_custom_call.1} parent=1 // pred_fallthru
      _
    // Predicated region
    $region30: #{tpu_custom_call.1} parent=1 // pred_check
      _
    $region31: #{tpu_custom_call.1} parent=1 // pred_check_branch
      %304 = sbr.rel (0) target = $region33
    $region32: #{tpu_custom_call.1} parent=1 // pred_region
      %305 = dma.done [#allocation6], 128
    $region33: #{tpu_custom_call.1} parent=1 // pred_fallthru
      _
    %306 = vsyncpa [#allocation5], 1
    %307 = vsyncpa [#allocation8], 1
    %308 = vsyncpa [#allocation6], 1

</llo_original>
